<compile_context>
chip_gen: v7x
topology: tpu7x:2x2x1
jax: 0.10.0
libtpu: 0.0.40
codegen_flags: <defaults>
</compile_context>

<pallas_src>
import jax
import jax.numpy as jnp
from jax import lax
from jax.experimental import pallas as pl
from jax.experimental.pallas import tpu as pltpu


_SIGMA = 0.1
_LN_EPS = 1e-5
_INV_SQRT2 = 0.7071067811865476


def _projection_head_kernel(x_ref, w1_ref, w2_ref, avg_ref, prm_ref, o_ref):
    """Fused forward for one packed row tile.

    x_ref  : (TM, PACK*E)   PACK logical rows packed per physical row
    w1_ref : (PACK*E, PACK*P)  block-diag(W1^T)
    w2_ref : (PACK*P, PACK*P)  block-diag(W2^T)
    avg_ref: (PACK*P, PACK*P)  block-diag(1/P) group-averaging matrix
    prm_ref: (4, PACK*P)       rows = [b1, b2, gamma, beta], each tiled PACK x
    o_ref  : (TM, PACK*P)
    """
    x = x_ref[...]

    # Gaussian feature map: exp(-x^2 / (2*sigma^2))        (EUP)
    g = jnp.exp(x * x * (-1.0 / (2.0 * _SIGMA * _SIGMA)))

    b1 = prm_ref[0:1, :]
    b2 = prm_ref[1:2, :]
    gamma = prm_ref[2:3, :]
    beta = prm_ref[3:4, :]

    # Linear 1 (projection), per-logical-row via block-diag weights   (MXU)
    projected = jnp.dot(g, w1_ref[...], preferred_element_type=jnp.float32) + b1

    # Exact GELU (matches torch.nn.GELU(approximate='none'))
    h = 0.5 * projected * (1.0 + lax.erf(projected * _INV_SQRT2))

    # Linear 2 (fc) + residual
    y = jnp.dot(h, w2_ref[...], preferred_element_type=jnp.float32)
    y = y + b2 + projected

    # LayerNorm over each logical row (group of P lanes): mean / variance via
    # the block-diagonal averaging matmul -> stays fully lane-dense.
    mean = jnp.dot(y, avg_ref[...], preferred_element_type=jnp.float32)
    centered = y - mean
    var = jnp.dot(centered * centered, avg_ref[...],
                  preferred_element_type=jnp.float32)
    o_ref[...] = (centered * lax.rsqrt(var + _LN_EPS)) * gamma + beta


def projection_head_forward(x, w1, b1, w2, b2, gamma, beta, *, row_tile=8192):
    """ProjectionHead_desc.forward.

    x: (N, E) f32; w1: (P, E); w2: (P, P); b1/b2/gamma/beta: (P,).
    Returns (N, P) f32.

    row_tile = logical rows per grid step.  Default 8192 moves ~3 MB/step
    (HBM-roofline regime) while the double-buffered working set stays well
    inside default scoped VMEM on v5e/v6e/v7x.
    """
    n, e = x.shape
    p = w1.shape[0]
    f32 = jnp.float32

    # Lane-density pack factor: logical rows per physical 128-lane row.
    pack = (128 // p) if (p <= 128 and 128 % p == 0) else 1

    x_in = jnp.asarray(x, f32)
    n_p = pl.cdiv(n, pack) * pack
    if n_p != n:
        # Only when N % pack != 0: pads at most pack-1 rows (negligible).
        x_in = jnp.pad(x_in, ((0, n_p - n), (0, 0)))
    n_rows = n_p // pack
    x_packed = x_in.reshape(n_rows, pack * e)            # free (row-major)

    # One-time parameter layout plumbing (outside the kernel):
    eye = jnp.eye(pack, dtype=f32)
    w1_bd = jnp.kron(eye, jnp.asarray(w1, f32).T)        # (pack*E, pack*P)
    w2_bd = jnp.kron(eye, jnp.asarray(w2, f32).T)        # (pack*P, pack*P)
    avg = jnp.kron(eye, jnp.full((p, p), 1.0 / p, f32))  # (pack*P, pack*P)
    params = jnp.stack([
        jnp.tile(jnp.asarray(b1, f32), pack),
        jnp.tile(jnp.asarray(b2, f32), pack),
        jnp.tile(jnp.asarray(gamma, f32), pack),
        jnp.tile(jnp.asarray(beta, f32), pack),
    ])                                                    # (4, pack*P)

    # Tile selection (in packed rows).
    tm = min(max(row_tile // pack, 8), n_rows)
    if n_rows >= 16:
        # Keep >= 2 grid steps so v7x's two TensorCores both get work.
        tm = min(tm, ((pl.cdiv(n_rows, 2) + 7) // 8) * 8)
    if tm != n_rows:
        tm = max(8, (tm // 8) * 8)      # sublane-aligned when actually tiling

    pe, pp = pack * e, pack * p
    grid = (pl.cdiv(n_rows, tm),)       # ragged last block handled by Pallas

    out = pl.pallas_call(
        _projection_head_kernel,
        out_shape=jax.ShapeDtypeStruct((n_rows, pp), f32),
        grid_spec=pltpu.PrefetchScalarGridSpec(
            num_scalar_prefetch=0,
            grid=grid,
            in_specs=[
                pl.BlockSpec((tm, pe), lambda i: (i, 0)),   # packed x rows
                pl.BlockSpec((pe, pp), lambda i: (0, 0)),   # block-diag W1^T
                pl.BlockSpec((pp, pp), lambda i: (0, 0)),   # block-diag W2^T
                pl.BlockSpec((pp, pp), lambda i: (0, 0)),   # LN averaging mat
                pl.BlockSpec((4, pp), lambda i: (0, 0)),    # b1/b2/gamma/beta
            ],
            out_specs=pl.BlockSpec((tm, pp), lambda i: (i, 0)),
        ),
        compiler_params=pltpu.CompilerParams(
            dimension_semantics=("parallel",),   # row tiles are independent
        ),
    )(x_packed, w1_bd, w2_bd, avg, params)

    out = out.reshape(n_p, p)                              # free (row-major)
    return out if n_p == n else out[:n]


def _reference(x, w1, b1, w2, b2, gamma, beta):
    """Pure-JAX reference mirroring the PyTorch module."""
    g = jnp.exp(-(x ** 2) / (2.0 * _SIGMA ** 2))
    projected = g @ w1.T + b1
    h = 0.5 * projected * (1.0 + lax.erf(projected * _INV_SQRT2))
    y = h @ w2.T + b2 + projected
    mean = jnp.mean(y, axis=-1, keepdims=True)
    var = jnp.mean((y - mean) ** 2, axis=-1, keepdims=True)
    yn = (y - mean) / jnp.sqrt(var + _LN_EPS)
    return yn * gamma + beta


if __name__ == "__main__":
    n, embedding_dim, projection_dim = 8, 64, 32

    key = jax.random.PRNGKey(0)
    ks = jax.random.split(key, 5)
    x = jax.random.normal(ks[0], (n, embedding_dim), dtype=jnp.float32)

    # Deterministic Linear-style init (uniform in [-1/sqrt(fan_in), 1/sqrt(fan_in)]).
    bound1 = 1.0 / (embedding_dim ** 0.5)
    w1 = jax.random.uniform(ks[1], (projection_dim, embedding_dim),
                            minval=-bound1, maxval=bound1, dtype=jnp.float32)
    b1 = jax.random.uniform(ks[2], (projection_dim,),
                            minval=-bound1, maxval=bound1, dtype=jnp.float32)
    bound2 = 1.0 / (projection_dim ** 0.5)
    w2 = jax.random.uniform(ks[3], (projection_dim, projection_dim),
                            minval=-bound2, maxval=bound2, dtype=jnp.float32)
    b2 = jax.random.uniform(ks[4], (projection_dim,),
                            minval=-bound2, maxval=bound2, dtype=jnp.float32)
    gamma = jnp.ones((projection_dim,), dtype=jnp.float32)   # LayerNorm init
    beta = jnp.zeros((projection_dim,), dtype=jnp.float32)

    out = projection_head_forward(x, w1, b1, w2, b2, gamma, beta)
    out = jax.block_until_ready(out)

    ref = _reference(x, w1, b1, w2, b2, gamma, beta)
    assert out.shape == (n, projection_dim)
    assert jnp.allclose(out, ref, atol=1e-5, rtol=1e-5), "mismatch vs reference"
    print("KERNEL_OK")
</pallas_src>

<mosaic_0001>
module attributes {stable_mosaic.version = 11 : i64} {
  func.func @_projection_head_kernel(%arg0: i32, %arg1: memref<2x256xf32, #tpu.memory_space<vmem>>, %arg2: memref<256x128xf32, #tpu.memory_space<vmem>>, %arg3: memref<128x128xf32, #tpu.memory_space<vmem>>, %arg4: memref<128x128xf32, #tpu.memory_space<vmem>>, %arg5: memref<4x128xf32, #tpu.memory_space<vmem>>, %arg6: memref<2x128xf32, #tpu.memory_space<vmem>>) attributes {dimension_semantics = [#tpu.dimension_semantics<parallel>], iteration_bounds = array<i64: 1>, scalar_prefetch = 0 : i64, scratch_operands = 0 : i64, tpu.core_type = #tpu.core_type<tc>, window_params = [{transform_indices = @transform_0, window_bounds = array<i64: 2, 256>}, {pipeline_mode = #tpu.pipeline_mode<synchronous>, transform_indices = @transform_1, window_bounds = array<i64: 256, 128>}, {pipeline_mode = #tpu.pipeline_mode<synchronous>, transform_indices = @transform_2, window_bounds = array<i64: 128, 128>}, {pipeline_mode = #tpu.pipeline_mode<synchronous>, transform_indices = @transform_3, window_bounds = array<i64: 128, 128>}, {pipeline_mode = #tpu.pipeline_mode<synchronous>, transform_indices = @transform_4, window_bounds = array<i64: 4, 128>}, {transform_indices = @transform_5, window_bounds = array<i64: 2, 128>}]} {
    %c0 = arith.constant 0 : index
    %c0_0 = arith.constant 0 : index
    %0 = vector.load %arg1[%c0, %c0_0] : memref<2x256xf32, #tpu.memory_space<vmem>>, vector<2x256xf32>
    %1 = arith.mulf %0, %0 : vector<2x256xf32>
    %cst = arith.constant -5.000000e+01 : f32
    %2 = vector.broadcast %cst : f32 to vector<2x256xf32>
    %3 = arith.mulf %1, %2 : vector<2x256xf32>
    %4 = math.exp %3 : vector<2x256xf32>
    %c0_1 = arith.constant 0 : index
    %c0_2 = arith.constant 0 : index
    %5 = vector.load %arg5[%c0_1, %c0_2] : memref<4x128xf32, #tpu.memory_space<vmem>>, vector<1x128xf32>
    %c1 = arith.constant 1 : index
    %c0_3 = arith.constant 0 : index
    %6 = vector.load %arg5[%c1, %c0_3] : memref<4x128xf32, #tpu.memory_space<vmem>>, vector<1x128xf32>
    %c2 = arith.constant 2 : index
    %c0_4 = arith.constant 0 : index
    %7 = vector.load %arg5[%c2, %c0_4] : memref<4x128xf32, #tpu.memory_space<vmem>>, vector<1x128xf32>
    %c3 = arith.constant 3 : index
    %c0_5 = arith.constant 0 : index
    %8 = vector.load %arg5[%c3, %c0_5] : memref<4x128xf32, #tpu.memory_space<vmem>>, vector<1x128xf32>
    %c0_6 = arith.constant 0 : index
    %c0_7 = arith.constant 0 : index
    %9 = vector.load %arg2[%c0_6, %c0_7] : memref<256x128xf32, #tpu.memory_space<vmem>>, vector<256x128xf32>
    %cst_8 = arith.constant dense<0.000000e+00> : vector<2x128xf32>
    %10 = tpu.matmul %4, %9, %cst_8 {dimension_numbers = #tpu.dot_dimension_numbers<[1], [0], [0], [1], [0, 0, 1, 1], [], []>} : vector<2x256xf32>, vector<256x128xf32>, vector<2x128xf32> -> vector<2x128xf32>
    %11 = vector.broadcast %5 : vector<1x128xf32> to vector<2x128xf32>
    %12 = arith.addf %10, %11 : vector<2x128xf32>
    %cst_9 = arith.constant 5.000000e-01 : f32
    %13 = vector.broadcast %cst_9 : f32 to vector<2x128xf32>
    %14 = arith.mulf %13, %12 : vector<2x128xf32>
    %cst_10 = arith.constant 0.707106769 : f32
    %15 = vector.broadcast %cst_10 : f32 to vector<2x128xf32>
    %16 = arith.mulf %12, %15 : vector<2x128xf32>
    %17 = math.erf %16 : vector<2x128xf32>
    %cst_11 = arith.constant 1.000000e+00 : f32
    %18 = vector.broadcast %cst_11 : f32 to vector<2x128xf32>
    %19 = arith.addf %18, %17 : vector<2x128xf32>
    %20 = arith.mulf %14, %19 : vector<2x128xf32>
    %c0_12 = arith.constant 0 : index
    %c0_13 = arith.constant 0 : index
    %21 = vector.load %arg3[%c0_12, %c0_13] : memref<128x128xf32, #tpu.memory_space<vmem>>, vector<128x128xf32>
    %cst_14 = arith.constant dense<0.000000e+00> : vector<2x128xf32>
    %22 = tpu.matmul %20, %21, %cst_14 {dimension_numbers = #tpu.dot_dimension_numbers<[1], [0], [0], [1], [0, 0, 1, 1], [], []>} : vector<2x128xf32>, vector<128x128xf32>, vector<2x128xf32> -> vector<2x128xf32>
    %23 = vector.broadcast %6 : vector<1x128xf32> to vector<2x128xf32>
    %24 = arith.addf %22, %23 : vector<2x128xf32>
    %25 = arith.addf %24, %12 : vector<2x128xf32>
    %c0_15 = arith.constant 0 : index
    %c0_16 = arith.constant 0 : index
    %26 = vector.load %arg4[%c0_15, %c0_16] : memref<128x128xf32, #tpu.memory_space<vmem>>, vector<128x128xf32>
    %cst_17 = arith.constant dense<0.000000e+00> : vector<2x128xf32>
    %27 = tpu.matmul %25, %26, %cst_17 {dimension_numbers = #tpu.dot_dimension_numbers<[1], [0], [0], [1], [0, 0, 1, 1], [], []>} : vector<2x128xf32>, vector<128x128xf32>, vector<2x128xf32> -> vector<2x128xf32>
    %28 = arith.subf %25, %27 : vector<2x128xf32>
    %29 = arith.mulf %28, %28 : vector<2x128xf32>
    %c0_18 = arith.constant 0 : index
    %c0_19 = arith.constant 0 : index
    %30 = vector.load %arg4[%c0_18, %c0_19] : memref<128x128xf32, #tpu.memory_space<vmem>>, vector<128x128xf32>
    %cst_20 = arith.constant dense<0.000000e+00> : vector<2x128xf32>
    %31 = tpu.matmul %29, %30, %cst_20 {dimension_numbers = #tpu.dot_dimension_numbers<[1], [0], [0], [1], [0, 0, 1, 1], [], []>} : vector<2x128xf32>, vector<128x128xf32>, vector<2x128xf32> -> vector<2x128xf32>
    %cst_21 = arith.constant 9.99999974E-6 : f32
    %32 = vector.broadcast %cst_21 : f32 to vector<2x128xf32>
    %33 = arith.addf %31, %32 : vector<2x128xf32>
    %34 = math.rsqrt %33 : vector<2x128xf32>
    %35 = arith.mulf %28, %34 : vector<2x128xf32>
    %36 = vector.broadcast %7 : vector<1x128xf32> to vector<2x128xf32>
    %37 = arith.mulf %35, %36 : vector<2x128xf32>
    %38 = vector.broadcast %8 : vector<1x128xf32> to vector<2x128xf32>
    %39 = arith.addf %37, %38 : vector<2x128xf32>
    %c0_22 = arith.constant 0 : index
    %c0_23 = arith.constant 0 : index
    %40 = vector.load %arg6[%c0_22, %c0_23] : memref<2x128xf32, #tpu.memory_space<vmem>>, vector<2x128xf32>
    tpu.vector_store %arg6[%c0_22, %c0_23], %39 {strides = array<i32>} : memref<2x128xf32, #tpu.memory_space<vmem>>, vector<2x128xf32>,
    return
  }
  func.func @transform_0(%arg0: i32) -> (i32, i32) {
    %c0_i32 = arith.constant 0 : i32
    %c0_i32_0 = arith.constant 0 : i32
    return %arg0, %c0_i32 : i32, i32
  }
  func.func @transform_1(%arg0: i32) -> (i32, i32) {
    %c0_i32 = arith.constant 0 : i32
    %c0_i32_0 = arith.constant 0 : i32
    %c0_i32_1 = arith.constant 0 : i32
    return %c0_i32, %c0_i32_0 : i32, i32
  }
  func.func @transform_2(%arg0: i32) -> (i32, i32) {
    %c0_i32 = arith.constant 0 : i32
    %c0_i32_0 = arith.constant 0 : i32
    %c0_i32_1 = arith.constant 0 : i32
    return %c0_i32, %c0_i32_0 : i32, i32
  }
  func.func @transform_3(%arg0: i32) -> (i32, i32) {
    %c0_i32 = arith.constant 0 : i32
    %c0_i32_0 = arith.constant 0 : i32
    %c0_i32_1 = arith.constant 0 : i32
    return %c0_i32, %c0_i32_0 : i32, i32
  }
  func.func @transform_4(%arg0: i32) -> (i32, i32) {
    %c0_i32 = arith.constant 0 : i32
    %c0_i32_0 = arith.constant 0 : i32
    %c0_i32_1 = arith.constant 0 : i32
    return %c0_i32, %c0_i32_0 : i32, i32
  }
  func.func @transform_5(%arg0: i32) -> (i32, i32) {
    %c0_i32 = arith.constant 0 : i32
    %c0_i32_0 = arith.constant 0 : i32
    return %arg0, %c0_i32 : i32, i32
  }
}

</mosaic_0001>

<llo_original>
// kernel: tpu_custom_call.1
$region0: #{tpu_custom_call.1}
  #allocation0 [shape = 'u32[]', space=smem, size = 0x4, offset = 0x4, fixed_abs, tag = 'smem constant byte address 0x4 - core index']
  #allocation1 [shape = 'u32[144,128]{1,0:T(1,128)}', space=vmem, size = 0x12000, scoped, tag = 'internal scratch']
  %s0 = inlined_call_operand.hbm [shape: f32[2,256], index: 0, kind: input, shape index: {}]
  %s1 = inlined_call_operand.hbm [shape: f32[256,128], index: 1, kind: input, shape index: {}]
  %s2 = inlined_call_operand.hbm [shape: f32[128,128], index: 2, kind: input, shape index: {}]
  %s3 = inlined_call_operand.hbm [shape: f32[128,128], index: 3, kind: input, shape index: {}]
  %s4 = inlined_call_operand.vmem [shape: f32[4,128], index: 4, kind: input, shape index: {}]
  %s5 = inlined_call_operand.hbm [shape: f32[2,128], index: 5, kind: output, shape index: {}]
  %s6 = sld [smem:[#allocation0]]
  $region46: #{tpu_custom_call.1} parent=0
    _
  %s8 = ssub.s32 1, %s6
  %s9 = scalar_select 0, %s8, %s6
  $region1: #{tpu_custom_call.1} parent=0
    #allocation2 [shape = 'u8[2048]{0}', space=vmem, size = 0x800, scoped, tag = 'input window, operand 0, single buffered']
    #allocation3 [shape = 's32[1]{0}', space=sflag, size = 0x4, scoped, tag = 'scoped memory for tpu_custom_call.1']
    #allocation4 [shape = 's32[1]{0}', space=sflag, size = 0x4, scoped, tag = 'scoped memory for tpu_custom_call.1']
    #allocation5 [shape = 'u8[131072]{0}', space=vmem, size = 0x20000, scoped, tag = 'input window, operand 1, single buffered']
    #allocation6 [shape = 's32[1]{0}', space=sflag, size = 0x4, scoped, tag = 'scoped memory for tpu_custom_call.1']
    #allocation7 [shape = 'u8[65536]{0}', space=vmem, size = 0x10000, scoped, tag = 'input window, operand 2, single buffered']
    #allocation8 [shape = 'u8[65536]{0}', space=vmem, size = 0x10000, scoped, tag = 'input window, operand 3, single buffered']
    #allocation9 [shape = 's32[1]{0}', space=sflag, size = 0x4, scoped, tag = 'scoped memory for tpu_custom_call.1']
    #allocation10 [shape = 'u8[1024]{0}', space=vmem, size = 0x400, scoped, tag = 'output window, operand 0, single buffered']
    %10 = vsyncpa [#allocation3], 0
    %11 = vsyncpa [#allocation6], 0
    %12 = vsyncpa [#allocation9], 0
    %13 = vsyncpa [#allocation4], 0
    // Predicated region
    $region2: #{tpu_custom_call.1} parent=1 // pred_check
      _
    $region3: #{tpu_custom_call.1} parent=1 // pred_check_branch
      %15 = sbr.rel (0) target = $region5
    $region4: #{tpu_custom_call.1} parent=1 // pred_region
      %s17 = ssub.s32 64, 64
      %18 = vsyncadd [#allocation3], %s17
      %s20 = sshll.u32 [#allocation2], 4
      %s21 = int_to_ptr.vmem [resolvable:$true] %s20
      %23 = dma.hbm_to_vmem [thread:$0]  %s0, 64, %s21, [#allocation3]
    $region5: #{tpu_custom_call.1} parent=1 // pred_fallthru
      _
    // Predicated region
    $region6: #{tpu_custom_call.1} parent=1 // pred_check
      _
    $region7: #{tpu_custom_call.1} parent=1 // pred_check_branch
      %25 = sbr.rel (0) target = $region9
    $region8: #{tpu_custom_call.1} parent=1 // pred_region
      %s27 = ssub.s32 4096, 4096
      %28 = vsyncadd [#allocation6], %s27
      %s29 = sshll.u32 [#allocation5], 4
      %s30 = int_to_ptr.vmem [resolvable:$true] %s29
      %35 = dma.hbm_to_vmem [thread:$0]  %s1, 4096, %s30, [#allocation6], 128, 128, 8
    $region9: #{tpu_custom_call.1} parent=1 // pred_fallthru
      _
    // Predicated region
    $region10: #{tpu_custom_call.1} parent=1 // pred_check
      _
    $region11: #{tpu_custom_call.1} parent=1 // pred_check_branch
      %37 = sbr.rel (0) target = $region13
    $region12: #{tpu_custom_call.1} parent=1 // pred_region
      %s39 = ssub.s32 2048, 2048
      %40 = vsyncadd [#allocation6], %s39
      %s41 = sshll.u32 [#allocation7], 4
      %s42 = int_to_ptr.vmem [resolvable:$true] %s41
      %47 = dma.hbm_to_vmem [thread:$0]  %s2, 2048, %s42, [#allocation6], 128, 128, 8
    $region13: #{tpu_custom_call.1} parent=1 // pred_fallthru
      _
    // Predicated region
    $region14: #{tpu_custom_call.1} parent=1 // pred_check
      _
    $region15: #{tpu_custom_call.1} parent=1 // pred_check_branch
      %49 = sbr.rel (0) target = $region17
    $region16: #{tpu_custom_call.1} parent=1 // pred_region
      %s51 = ssub.s32 2048, 2048
      %52 = vsyncadd [#allocation9], %s51
      %s53 = sshll.u32 [#allocation8], 4
      %s54 = int_to_ptr.vmem [resolvable:$true] %s53
      %59 = dma.hbm_to_vmem [thread:$0]  %s3, 2048, %s54, [#allocation9], 128, 128, 8
    $region17: #{tpu_custom_call.1} parent=1 // pred_fallthru
      _
    // Predicated region
    $region18: #{tpu_custom_call.1} parent=1 // pred_check
      _
    $region19: #{tpu_custom_call.1} parent=1 // pred_check_branch
      %61 = sbr.rel (0) target = $region21
    $region20: #{tpu_custom_call.1} parent=1 // pred_region
      _
    $region21: #{tpu_custom_call.1} parent=1 // pred_fallthru
      _
    // Predicated region
    $region22: #{tpu_custom_call.1} parent=1 // pred_check
      _
    $region23: #{tpu_custom_call.1} parent=1 // pred_check_branch
      %63 = sbr.rel (0) target = $region25
    $region24: #{tpu_custom_call.1} parent=1 // pred_region
      %64 = dma.done [#allocation3], 64
    $region25: #{tpu_custom_call.1} parent=1 // pred_fallthru
      _
    // Predicated region
    $region26: #{tpu_custom_call.1} parent=1 // pred_check
      _
    $region27: #{tpu_custom_call.1} parent=1 // pred_check_branch
      %66 = sbr.rel (0) target = $region29
    $region28: #{tpu_custom_call.1} parent=1 // pred_region
      %67 = dma.done [#allocation6], 4096
    $region29: #{tpu_custom_call.1} parent=1 // pred_fallthru
      _
    // Predicated region
    $region30: #{tpu_custom_call.1} parent=1 // pred_check
      _
    $region31: #{tpu_custom_call.1} parent=1 // pred_check_branch
      %69 = sbr.rel (0) target = $region33
    $region32: #{tpu_custom_call.1} parent=1 // pred_region
      %70 = dma.done [#allocation6], 2048
    $region33: #{tpu_custom_call.1} parent=1 // pred_fallthru
      _
    // Predicated region
    $region34: #{tpu_custom_call.1} parent=1 // pred_check
      _
    $region35: #{tpu_custom_call.1} parent=1 // pred_check_branch
      %72 = sbr.rel (0) target = $region37
    $region36: #{tpu_custom_call.1} parent=1 // pred_region
      %73 = dma.done [#allocation9], 2048
    $region37: #{tpu_custom_call.1} parent=1 // pred_fallthru
      _
    %v74 = vld [vmem:[#allocation2] sm:$0xf]
    %v75 = vmul.f32 %v74, %v74
    %v76 = vmul.f32 %v75, -50.0
    %v77 = vmul.f32 %v76, 1.442695
    %v78 = vpow.pop %v77
    %v79 = vld [vmem:[%s4] sm:$0x1]
    %v80 = vld [vmem:[%s4 + $0x1] sm:$0x1]
    %v81 = vld [vmem:[%s4 + $0x2] sm:$0x1]
    %v82 = vld [vmem:[%s4 + $0x3] sm:$0x1]
    %v83 = vld [vmem:[#allocation5] sm:$0xff]
    %v84 = vld [vmem:[#allocation5 + $0x8] sm:$0xff]
    %v85 = vld [vmem:[#allocation5 + $0x10] sm:$0xff]
    %v86 = vld [vmem:[#allocation5 + $0x18] sm:$0xff]
    %v87 = vld [vmem:[#allocation5 + $0x20] sm:$0xff]
    %v88 = vld [vmem:[#allocation5 + $0x28] sm:$0xff]
    %v89 = vld [vmem:[#allocation5 + $0x30] sm:$0xff]
    %v90 = vld [vmem:[#allocation5 + $0x38] sm:$0xff]
    %v91 = vld [vmem:[#allocation5 + $0x40] sm:$0xff]
    %v92 = vld [vmem:[#allocation5 + $0x48] sm:$0xff]
    %v93 = vld [vmem:[#allocation5 + $0x50] sm:$0xff]
    %v94 = vld [vmem:[#allocation5 + $0x58] sm:$0xff]
    %v95 = vld [vmem:[#allocation5 + $0x60] sm:$0xff]
    %v96 = vld [vmem:[#allocation5 + $0x68] sm:$0xff]
    %v97 = vld [vmem:[#allocation5 + $0x70] sm:$0xff]
    %v98 = vld [vmem:[#allocation5 + $0x78] sm:$0xff]
    %v99 = vld [vmem:[#allocation5 + $0x80] sm:$0xff]
    %v100 = vld [vmem:[#allocation5 + $0x88] sm:$0xff]
    %v101 = vld [vmem:[#allocation5 + $0x90] sm:$0xff]
    %v102 = vld [vmem:[#allocation5 + $0x98] sm:$0xff]
    %v103 = vld [vmem:[#allocation5 + $0xa0] sm:$0xff]
    %v104 = vld [vmem:[#allocation5 + $0xa8] sm:$0xff]
    %v105 = vld [vmem:[#allocation5 + $0xb0] sm:$0xff]
    %v106 = vld [vmem:[#allocation5 + $0xb8] sm:$0xff]
    %v107 = vld [vmem:[#allocation5 + $0xc0] sm:$0xff]
    %v108 = vld [vmem:[#allocation5 + $0xc8] sm:$0xff]
    %v109 = vld [vmem:[#allocation5 + $0xd0] sm:$0xff]
    %v110 = vld [vmem:[#allocation5 + $0xd8] sm:$0xff]
    %v111 = vld [vmem:[#allocation5 + $0xe0] sm:$0xff]
    %v112 = vld [vmem:[#allocation5 + $0xe8] sm:$0xff]
    %v113 = vld [vmem:[#allocation5 + $0xf0] sm:$0xff]
    %v114 = vld [vmem:[#allocation5 + $0xf8] sm:$0xff]
    %v115 = vlaneseq
    %v116 = vshrl.u32 %v115, 7
    %v117 = vsub.s32 0, %v116
    %v118 = vrot.slane %v79, %v117
    %v121 = vunpack.c.l.s4 1983009808
    %v122 = vunpack.c.0.s8 %v121
    %v123 = vlaneseq
    %v124 = vshrl.u32 %v123, 7
    %v125 = vsub.s32 %v122, %v124
    %v126 = vrot.slane %v78, %v125
    %v127 = vcombine.high %v126, %v126
    %130 = vmatprep.subr.mxu0 0.0
    %131 = vmatpush1.msra.mxu0 %v83
    %132 = vmatprep.subr.mxu0 0.0
    %133 = vmatpush1.msra.mxu0 %v84
    %134 = vmatprep.subr.mxu0 0.0
    %135 = vmatpush1.msra.mxu0 %v85
    %136 = vmatprep.subr.mxu0 0.0
    %137 = vmatpush1.msra.mxu0 %v86
    %138 = vmatprep.subr.mxu0 0.0
    %139 = vmatpush1.msra.mxu0 %v87
    %140 = vmatprep.subr.mxu0 0.0
    %141 = vmatpush1.msra.mxu0 %v88
    %142 = vmatprep.subr.mxu0 0.0
    %143 = vmatpush1.msra.mxu0 %v89
    %144 = vmatprep.subr.mxu0 0.0
    %145 = vmatpush1.msra.mxu0 %v90
    %146 = vmatprep.subr.mxu0 0.0
    %147 = vmatpush1.msra.mxu0 %v91
    %148 = vmatprep.subr.mxu0 0.0
    %149 = vmatpush1.msra.mxu0 %v92
    %150 = vmatprep.subr.mxu0 0.0
    %151 = vmatpush1.msra.mxu0 %v93
    %152 = vmatprep.subr.mxu0 0.0
    %153 = vmatpush1.msra.mxu0 %v94
    %154 = vmatprep.subr.mxu0 0.0
    %155 = vmatpush1.msra.mxu0 %v95
    %156 = vmatprep.subr.mxu0 0.0
    %157 = vmatpush1.msra.mxu0 %v96
    %158 = vmatprep.subr.mxu0 0.0
    %159 = vmatpush1.msra.mxu0 %v97
    %160 = vmatprep.subr.mxu0 0.0
    %161 = vmatpush1.msra.mxu0 %v98
    %162 = vmatprep.subr.mxu0 0.0
    %163 = vmatpush1.msra.mxu0 %v99
    %164 = vmatprep.subr.mxu0 0.0
    %165 = vmatpush1.msra.mxu0 %v100
    %166 = vmatprep.subr.mxu0 0.0
    %167 = vmatpush1.msra.mxu0 %v101
    %168 = vmatprep.subr.mxu0 0.0
    %169 = vmatpush1.msra.mxu0 %v102
    %170 = vmatprep.subr.mxu0 0.0
    %171 = vmatpush1.msra.mxu0 %v103
    %172 = vmatprep.subr.mxu0 0.0
    %173 = vmatpush1.msra.mxu0 %v104
    %174 = vmatprep.subr.mxu0 0.0
    %175 = vmatpush1.msra.mxu0 %v105
    %176 = vmatprep.subr.mxu0 0.0
    %177 = vmatpush1.msra.mxu0 %v106
    %178 = vmatprep.subr.mxu0 0.0
    %179 = vmatpush1.msra.mxu0 %v107
    %180 = vmatprep.subr.mxu0 0.0
    %181 = vmatpush1.msra.mxu0 %v108
    %182 = vmatprep.subr.mxu0 0.0
    %183 = vmatpush1.msra.mxu0 %v109
    %184 = vmatprep.subr.mxu0 0.0
    %185 = vmatpush1.msra.mxu0 %v110
    %186 = vmatprep.subr.mxu0 0.0
    %187 = vmatpush1.msra.mxu0 %v111
    %188 = vmatprep.subr.mxu0 0.0
    %189 = vmatpush1.msra.mxu0 %v112
    %190 = vmatprep.subr.mxu0 0.0
    %191 = vmatpush1.msra.mxu0 %v113
    %192 = vmatprep.subr.mxu0 0.0
    %193 = vmatpush1.msra.mxu0 %v114
    %194 = vmatprep.mubr.f32.mxu0 %v127
    %195 = vmatmul.mubr.f32.gmra.mrb[0].mxu0 %v126
    %v196 = vpop.f32.mrb[0].mxu0
    %v197 = vadd.f32 %v118, %v196
    %v198 = vpop.f32.mrb[0].mxu0
    %199 = vdwg.mxu0
    %v200 = vmul.f32 %v197, 0.5
    %v201 = vmul.f32 %v197, 0.70710677
    %v202 = verf.f32.pop %v201
    %v203 = vadd.f32 %v202, 1.0
    %v204 = vmul.f32 %v200, %v203
    %v205 = vld [vmem:[#allocation7] sm:$0xff]
    %v206 = vld [vmem:[#allocation7 + $0x8] sm:$0xff]
    %v207 = vld [vmem:[#allocation7 + $0x10] sm:$0xff]
    %v208 = vld [vmem:[#allocation7 + $0x18] sm:$0xff]
    %v209 = vld [vmem:[#allocation7 + $0x20] sm:$0xff]
    %v210 = vld [vmem:[#allocation7 + $0x28] sm:$0xff]
    %v211 = vld [vmem:[#allocation7 + $0x30] sm:$0xff]
    %v212 = vld [vmem:[#allocation7 + $0x38] sm:$0xff]
    %v213 = vld [vmem:[#allocation7 + $0x40] sm:$0xff]
    %v214 = vld [vmem:[#allocation7 + $0x48] sm:$0xff]
    %v215 = vld [vmem:[#allocation7 + $0x50] sm:$0xff]
    %v216 = vld [vmem:[#allocation7 + $0x58] sm:$0xff]
    %v217 = vld [vmem:[#allocation7 + $0x60] sm:$0xff]
    %v218 = vld [vmem:[#allocation7 + $0x68] sm:$0xff]
    %v219 = vld [vmem:[#allocation7 + $0x70] sm:$0xff]
    %v220 = vld [vmem:[#allocation7 + $0x78] sm:$0xff]
    %v221 = vlaneseq
    %v222 = vshrl.u32 %v221, 7
    %v223 = vsub.s32 0, %v222
    %v224 = vrot.slane %v80, %v223
    %225 = vmatprep.subr.mxu0 0.0
    %226 = vmatpush1.msra.mxu0 %v205
    %227 = vmatprep.subr.mxu0 0.0
    %228 = vmatpush1.msra.mxu0 %v206
    %229 = vmatprep.subr.mxu0 0.0
    %230 = vmatpush1.msra.mxu0 %v207
    %231 = vmatprep.subr.mxu0 0.0
    %232 = vmatpush1.msra.mxu0 %v208
    %233 = vmatprep.subr.mxu0 0.0
    %234 = vmatpush1.msra.mxu0 %v209
    %235 = vmatprep.subr.mxu0 0.0
    %236 = vmatpush1.msra.mxu0 %v210
    %237 = vmatprep.subr.mxu0 0.0
    %238 = vmatpush1.msra.mxu0 %v211
    %239 = vmatprep.subr.mxu0 0.0
    %240 = vmatpush1.msra.mxu0 %v212
    %241 = vmatprep.subr.mxu0 0.0
    %242 = vmatpush1.msra.mxu0 %v213
    %243 = vmatprep.subr.mxu0 0.0
    %244 = vmatpush1.msra.mxu0 %v214
    %245 = vmatprep.subr.mxu0 0.0
    %246 = vmatpush1.msra.mxu0 %v215
    %247 = vmatprep.subr.mxu0 0.0
    %248 = vmatpush1.msra.mxu0 %v216
    %249 = vmatprep.subr.mxu0 0.0
    %250 = vmatpush1.msra.mxu0 %v217
    %251 = vmatprep.subr.mxu0 0.0
    %252 = vmatpush1.msra.mxu0 %v218
    %253 = vmatprep.subr.mxu0 0.0
    %254 = vmatpush1.msra.mxu0 %v219
    %255 = vmatprep.subr.mxu0 0.0
    %256 = vmatpush1.msra.mxu0 %v220
    %257 = vmatprep.subr.mxu0 0.0
    %258 = vmatpush1.msra.mxu0 0.0
    %259 = vmatprep.subr.mxu0 0.0
    %260 = vmatpush1.msra.mxu0 0.0
    %261 = vmatprep.subr.mxu0 0.0
    %262 = vmatpush1.msra.mxu0 0.0
    %263 = vmatprep.subr.mxu0 0.0
    %264 = vmatpush1.msra.mxu0 0.0
    %265 = vmatprep.subr.mxu0 0.0
    %266 = vmatpush1.msra.mxu0 0.0
    %267 = vmatprep.subr.mxu0 0.0
    %268 = vmatpush1.msra.mxu0 0.0
    %269 = vmatprep.subr.mxu0 0.0
    %270 = vmatpush1.msra.mxu0 0.0
    %271 = vmatprep.subr.mxu0 0.0
    %272 = vmatpush1.msra.mxu0 0.0
    %273 = vmatprep.subr.mxu0 0.0
    %274 = vmatpush1.msra.mxu0 0.0
    %275 = vmatprep.subr.mxu0 0.0
    %276 = vmatpush1.msra.mxu0 0.0
    %277 = vmatprep.subr.mxu0 0.0
    %278 = vmatpush1.msra.mxu0 0.0
    %279 = vmatprep.subr.mxu0 0.0
    %280 = vmatpush1.msra.mxu0 0.0
    %281 = vmatprep.subr.mxu0 0.0
    %282 = vmatpush1.msra.mxu0 0.0
    %283 = vmatprep.subr.mxu0 0.0
    %284 = vmatpush1.msra.mxu0 0.0
    %285 = vmatprep.subr.mxu0 0.0
    %286 = vmatpush1.msra.mxu0 0.0
    %287 = vmatprep.subr.mxu0 0.0
    %288 = vmatpush1.msra.mxu0 0.0
    %289 = vmatprep.mubr.f32.mxu0 0.0
    %290 = vmatmul.mubr.f32.gmra.mrb[0].mxu0 %v204
    %v291 = vpop.f32.mrb[0].mxu0
    %v292 = vadd.f32 %v224, %v291
    %v293 = vpop.f32.mrb[0].mxu0
    %294 = vdwg.mxu0
    %v295 = vadd.f32 %v292, %v197
    %v296 = vld [vmem:[#allocation8] sm:$0xff]
    %v297 = vld [vmem:[#allocation8 + $0x8] sm:$0xff]
    %v298 = vld [vmem:[#allocation8 + $0x10] sm:$0xff]
    %v299 = vld [vmem:[#allocation8 + $0x18] sm:$0xff]
    %v300 = vld [vmem:[#allocation8 + $0x20] sm:$0xff]
    %v301 = vld [vmem:[#allocation8 + $0x28] sm:$0xff]
    %v302 = vld [vmem:[#allocation8 + $0x30] sm:$0xff]
    %v303 = vld [vmem:[#allocation8 + $0x38] sm:$0xff]
    %v304 = vld [vmem:[#allocation8 + $0x40] sm:$0xff]
    %v305 = vld [vmem:[#allocation8 + $0x48] sm:$0xff]
    %v306 = vld [vmem:[#allocation8 + $0x50] sm:$0xff]
    %v307 = vld [vmem:[#allocation8 + $0x58] sm:$0xff]
    %v308 = vld [vmem:[#allocation8 + $0x60] sm:$0xff]
    %v309 = vld [vmem:[#allocation8 + $0x68] sm:$0xff]
    %v310 = vld [vmem:[#allocation8 + $0x70] sm:$0xff]
    %v311 = vld [vmem:[#allocation8 + $0x78] sm:$0xff]
    %312 = vmatprep.subr.mxu0 0.0
    %313 = vmatpush1.msra.mxu0 %v296
    %314 = vmatprep.subr.mxu0 0.0
    %315 = vmatpush1.msra.mxu0 %v297
    %316 = vmatprep.subr.mxu0 0.0
    %317 = vmatpush1.msra.mxu0 %v298
    %318 = vmatprep.subr.mxu0 0.0
    %319 = vmatpush1.msra.mxu0 %v299
    %320 = vmatprep.subr.mxu0 0.0
    %321 = vmatpush1.msra.mxu0 %v300
    %322 = vmatprep.subr.mxu0 0.0
    %323 = vmatpush1.msra.mxu0 %v301
    %324 = vmatprep.subr.mxu0 0.0
    %325 = vmatpush1.msra.mxu0 %v302
    %326 = vmatprep.subr.mxu0 0.0
    %327 = vmatpush1.msra.mxu0 %v303
    %328 = vmatprep.subr.mxu0 0.0
    %329 = vmatpush1.msra.mxu0 %v304
    %330 = vmatprep.subr.mxu0 0.0
    %331 = vmatpush1.msra.mxu0 %v305
    %332 = vmatprep.subr.mxu0 0.0
    %333 = vmatpush1.msra.mxu0 %v306
    %334 = vmatprep.subr.mxu0 0.0
    %335 = vmatpush1.msra.mxu0 %v307
    %336 = vmatprep.subr.mxu0 0.0
    %337 = vmatpush1.msra.mxu0 %v308
    %338 = vmatprep.subr.mxu0 0.0
    %339 = vmatpush1.msra.mxu0 %v309
    %340 = vmatprep.subr.mxu0 0.0
    %341 = vmatpush1.msra.mxu0 %v310
    %342 = vmatprep.subr.mxu0 0.0
    %343 = vmatpush1.msra.mxu0 %v311
    %344 = vmatprep.subr.mxu0 0.0
    %345 = vmatpush1.msra.mxu0 0.0
    %346 = vmatprep.subr.mxu0 0.0
    %347 = vmatpush1.msra.mxu0 0.0
    %348 = vmatprep.subr.mxu0 0.0
    %349 = vmatpush1.msra.mxu0 0.0
    %350 = vmatprep.subr.mxu0 0.0
    %351 = vmatpush1.msra.mxu0 0.0
    %352 = vmatprep.subr.mxu0 0.0
    %353 = vmatpush1.msra.mxu0 0.0
    %354 = vmatprep.subr.mxu0 0.0
    %355 = vmatpush1.msra.mxu0 0.0
    %356 = vmatprep.subr.mxu0 0.0
    %357 = vmatpush1.msra.mxu0 0.0
    %358 = vmatprep.subr.mxu0 0.0
    %359 = vmatpush1.msra.mxu0 0.0
    %360 = vmatprep.subr.mxu0 0.0
    %361 = vmatpush1.msra.mxu0 0.0
    %362 = vmatprep.subr.mxu0 0.0
    %363 = vmatpush1.msra.mxu0 0.0
    %364 = vmatprep.subr.mxu0 0.0
    %365 = vmatpush1.msra.mxu0 0.0
    %366 = vmatprep.subr.mxu0 0.0
    %367 = vmatpush1.msra.mxu0 0.0
    %368 = vmatprep.subr.mxu0 0.0
    %369 = vmatpush1.msra.mxu0 0.0
    %370 = vmatprep.subr.mxu0 0.0
    %371 = vmatpush1.msra.mxu0 0.0
    %372 = vmatprep.subr.mxu0 0.0
    %373 = vmatpush1.msra.mxu0 0.0
    %374 = vmatprep.subr.mxu0 0.0
    %375 = vmatpush1.msra.mxu0 0.0
    %376 = vmatprep.mubr.f32.mxu0 0.0
    %377 = vmatmul.mubr.f32.gmra.mrb[0].mxu0 %v295
    %v378 = vpop.f32.mrb[0].mxu0
    %v379 = vadd.f32 0.0, %v378
    %v380 = vpop.f32.mrb[0].mxu0
    %381 = vdwg.mxu0
    %v382 = vsub.f32 %v295, %v379
    %v383 = vmul.f32 %v382, %v382
    %384 = vmatprep.subr.mxu0 0.0
    %385 = vmatpush1.msra.mxu0 %v296
    %386 = vmatprep.subr.mxu0 0.0
    %387 = vmatpush1.msra.mxu0 %v297
    %388 = vmatprep.subr.mxu0 0.0
    %389 = vmatpush1.msra.mxu0 %v298
    %390 = vmatprep.subr.mxu0 0.0
    %391 = vmatpush1.msra.mxu0 %v299
    %392 = vmatprep.subr.mxu0 0.0
    %393 = vmatpush1.msra.mxu0 %v300
    %394 = vmatprep.subr.mxu0 0.0
    %395 = vmatpush1.msra.mxu0 %v301
    %396 = vmatprep.subr.mxu0 0.0
    %397 = vmatpush1.msra.mxu0 %v302
    %398 = vmatprep.subr.mxu0 0.0
    %399 = vmatpush1.msra.mxu0 %v303
    %400 = vmatprep.subr.mxu0 0.0
    %401 = vmatpush1.msra.mxu0 %v304
    %402 = vmatprep.subr.mxu0 0.0
    %403 = vmatpush1.msra.mxu0 %v305
    %404 = vmatprep.subr.mxu0 0.0
    %405 = vmatpush1.msra.mxu0 %v306
    %406 = vmatprep.subr.mxu0 0.0
    %407 = vmatpush1.msra.mxu0 %v307
    %408 = vmatprep.subr.mxu0 0.0
    %409 = vmatpush1.msra.mxu0 %v308
    %410 = vmatprep.subr.mxu0 0.0
    %411 = vmatpush1.msra.mxu0 %v309
    %412 = vmatprep.subr.mxu0 0.0
    %413 = vmatpush1.msra.mxu0 %v310
    %414 = vmatprep.subr.mxu0 0.0
    %415 = vmatpush1.msra.mxu0 %v311
    %416 = vmatprep.subr.mxu0 0.0
    %417 = vmatpush1.msra.mxu0 0.0
    %418 = vmatprep.subr.mxu0 0.0
    %419 = vmatpush1.msra.mxu0 0.0
    %420 = vmatprep.subr.mxu0 0.0
    %421 = vmatpush1.msra.mxu0 0.0
    %422 = vmatprep.subr.mxu0 0.0
    %423 = vmatpush1.msra.mxu0 0.0
    %424 = vmatprep.subr.mxu0 0.0
    %425 = vmatpush1.msra.mxu0 0.0
    %426 = vmatprep.subr.mxu0 0.0
    %427 = vmatpush1.msra.mxu0 0.0
    %428 = vmatprep.subr.mxu0 0.0
    %429 = vmatpush1.msra.mxu0 0.0
    %430 = vmatprep.subr.mxu0 0.0
    %431 = vmatpush1.msra.mxu0 0.0
    %432 = vmatprep.subr.mxu0 0.0
    %433 = vmatpush1.msra.mxu0 0.0
    %434 = vmatprep.subr.mxu0 0.0
    %435 = vmatpush1.msra.mxu0 0.0
    %436 = vmatprep.subr.mxu0 0.0
    %437 = vmatpush1.msra.mxu0 0.0
    %438 = vmatprep.subr.mxu0 0.0
    %439 = vmatpush1.msra.mxu0 0.0
    %440 = vmatprep.subr.mxu0 0.0
    %441 = vmatpush1.msra.mxu0 0.0
    %442 = vmatprep.subr.mxu0 0.0
    %443 = vmatpush1.msra.mxu0 0.0
    %444 = vmatprep.subr.mxu0 0.0
    %445 = vmatpush1.msra.mxu0 0.0
    %446 = vmatprep.subr.mxu0 0.0
    %447 = vmatpush1.msra.mxu0 0.0
    %448 = vmatprep.mubr.f32.mxu0 0.0
    %449 = vmatmul.mubr.f32.gmra.mrb[0].mxu0 %v383
    %v450 = vpop.f32.mrb[0].mxu0
    %v451 = vadd.f32 1e-05, %v450
    %v452 = vpop.f32.mrb[0].mxu0
    %453 = vdwg.mxu0
    %v454 = vrsqrt.pop %v451
    %v455 = vmul.f32 %v382, %v454
    %v456 = vlaneseq
    %v457 = vshrl.u32 %v456, 7
    %v458 = vsub.s32 0, %v457
    %v459 = vrot.slane %v81, %v458
    %v460 = vmul.f32 %v455, %v459
    %v461 = vlaneseq
    %v462 = vshrl.u32 %v461, 7
    %v463 = vsub.s32 0, %v462
    %v464 = vrot.slane %v82, %v463
    %v465 = vadd.f32 %v460, %v464
    %466 = vst [vmem:[#allocation10] sm:$0x3] %v465
    // Predicated region
    $region38: #{tpu_custom_call.1} parent=1 // pred_check
      _
    $region39: #{tpu_custom_call.1} parent=1 // pred_check_branch
      %468 = sbr.rel (0) target = $region41
    $region40: #{tpu_custom_call.1} parent=1 // pred_region
      %s470 = ssub.s32 32, 32
      %471 = vsyncadd [#allocation4], %s470
      %s473 = sshll.u32 [#allocation10], 4
      %s474 = int_to_ptr.vmem [resolvable:$true] %s473
      %476 = dma.vmem_to_hbm [thread:$0]  %s474, 32, %s5, [#allocation4]
    $region41: #{tpu_custom_call.1} parent=1 // pred_fallthru
      _
    // Predicated region
    $region42: #{tpu_custom_call.1} parent=1 // pred_check
      _
    $region43: #{tpu_custom_call.1} parent=1 // pred_check_branch
      %478 = sbr.rel (0) target = $region45
    $region44: #{tpu_custom_call.1} parent=1 // pred_region
      %479 = dma.done [#allocation4], 32
    $region45: #{tpu_custom_call.1} parent=1 // pred_fallthru
      _
    %480 = vsyncpa [#allocation3], 1
    %481 = vsyncpa [#allocation6], 1
    %482 = vsyncpa [#allocation9], 1
    %483 = vsyncpa [#allocation4], 1

</llo_original>
